<compile_context>
chip_gen: v7x
topology: tpu7x:2x2x1
jax: 0.10.0
libtpu: 0.0.40
codegen_flags: <defaults>
</compile_context>

<pallas_src>
import jax
import jax.numpy as jnp
from jax import lax
from jax.experimental import pallas as pl
from jax.experimental.pallas import tpu as pltpu


def _round_up(n, m):
    return ((n + m - 1) // m) * m


def dnn_kernel(x_ref, w1_ref, b1_ref, w2_ref, b2_ref, w3_ref, b3_ref, o_ref):
    """One batch tile of the MLP. x tile (B_TILE, 772) f32; weights resident."""
    # In-kernel cast to bf16 (VPU work, free in this DMA-bound regime).
    x = x_ref[...].astype(jnp.bfloat16)                                 # (bt, 772)

    # fc1 + ReLU   (dropout = identity in eval mode)
    h1 = jnp.dot(x, w1_ref[...], preferred_element_type=jnp.float32)    # (bt, H1) f32
    h1 = jnp.maximum(h1 + b1_ref[...], 0.0)

    # fc2 + ReLU
    h2 = jnp.dot(h1, w2_ref[...], preferred_element_type=jnp.float32)   # (bt, H2) f32
    h2 = jnp.maximum(h2 + b2_ref[...], 0.0)

    # fc3 (out_features = 1), computed directly in lane-dense (1, B_TILE) form:
    # contract w3 (1, H2) against h2's last dim.
    out_row = jnp.einsum(
        "oh,bh->ob", w3_ref[...], h2,
        preferred_element_type=jnp.float32)                             # (1, bt)
    o_ref[...] = out_row + b3_ref[...]                                  # b3 (1,1) broadcasts


def _choose_tiling(B, max_batch_tile, min_tiles):
    """Pick (b_tile, num_tiles): balanced tiles, lane-dense, no huge last-tile waste."""
    if B <= 128:
        # Single block spanning the full (tiny) batch: block == array extent.
        return B, 1
    target_tiles = max(pl.cdiv(B, max_batch_tile), min(min_tiles, pl.cdiv(B, 128)))
    b_tile = min(max_batch_tile, _round_up(pl.cdiv(B, target_tiles), 128))
    return b_tile, pl.cdiv(B, b_tile)


def dnn_forward(x, params, *, max_batch_tile=2048, min_tiles=8):
    """Run the MLP head; returns shape (B,) f32 (== PyTorch x.squeeze(1))."""
    w1, b1, w2, b2, w3, b3 = params          # w1: (772, H1) bf16, rest f32
    B, d_in = x.shape
    assert w1.shape[0] == d_in
    h1 = w1.shape[1]
    h2 = w2.shape[1]

    b_tile, num_tiles = _choose_tiling(B, max_batch_tile, min_tiles)
    out_cols = num_tiles * b_tile            # output padded so blocks divide evenly

    out = pl.pallas_call(
        dnn_kernel,
        out_shape=jax.ShapeDtypeStruct((1, out_cols), jnp.float32),
        grid_spec=pltpu.PrefetchScalarGridSpec(
            num_scalar_prefetch=0,
            grid=(num_tiles,),
            in_specs=[
                pl.BlockSpec((b_tile, d_in), lambda i: (i, 0)),   # x: streamed tiles (f32)
                pl.BlockSpec((d_in, h1), lambda i: (0, 0)),       # w1: resident (bf16)
                pl.BlockSpec((1, h1), lambda i: (0, 0)),          # b1
                pl.BlockSpec((h1, h2), lambda i: (0, 0)),         # w2
                pl.BlockSpec((1, h2), lambda i: (0, 0)),          # b2
                pl.BlockSpec((1, h2), lambda i: (0, 0)),          # w3 (stored (1, H2))
                pl.BlockSpec((1, 1), lambda i: (0, 0)),           # b3
            ],
            out_specs=pl.BlockSpec((1, b_tile), lambda i: (0, i)),  # lane-dense row
        ),
        compiler_params=pltpu.CompilerParams(
            dimension_semantics=("parallel",),
            vmem_limit_bytes=48 * 1024 * 1024,
        ),
    )(x, w1, b1, w2, b2, w3, b3)

    return out[0, :B]


def init_params(key, d_in, layer_sizes):
    """Deterministic init mimicking nn.Linear's U(-1/sqrt(fan_in), 1/sqrt(fan_in))."""
    h1, h2 = layer_sizes
    ks = jax.random.split(key, 6)

    def lin(kw, kb, fan_in, fan_out):
        bound = 1.0 / jnp.sqrt(fan_in)
        w = jax.random.uniform(kw, (fan_in, fan_out), jnp.float32, -bound, bound)
        b = jax.random.uniform(kb, (1, fan_out), jnp.float32, -bound, bound)
        return w, b

    w1, b1 = lin(ks[0], ks[1], d_in, h1)       # fc1
    w2, b2 = lin(ks[2], ks[3], h1, h2)         # fc2
    w3t, b3 = lin(ks[4], ks[5], h2, 1)         # fc3 (out=1)

    w1 = w1.astype(jnp.bfloat16)               # resident MXU weight, exact (772, H1)
    w3 = w3t.T                                 # (1, H2): lane-dense fc3 weight
    return (w1, b1, w2, b2, w3, b3)


def dnn_reference(x, params):
    """Pure-JAX reference (eval mode) with the same bf16 rounding of x / w1."""
    w1, b1, w2, b2, w3, b3 = params
    hp = lax.Precision.HIGHEST
    xq = x.astype(jnp.bfloat16).astype(jnp.float32)
    w1f = w1.astype(jnp.float32)
    h1 = jnp.maximum(jnp.dot(xq, w1f, precision=hp) + b1, 0.0)
    h2 = jnp.maximum(jnp.dot(h1, w2, precision=hp) + b2, 0.0)
    out = jnp.dot(h2, w3.T, precision=hp) + b3            # (B, 1)
    return out[:, 0]


if __name__ == "__main__":
    one_hot_enc_len = 3
    layer_sizes = [32, 32]
    d_in = 768 + 1 + one_hot_enc_len           # 772

    key = jax.random.PRNGKey(0)
    k_x, k_p, k_x2 = jax.random.split(key, 3)
    params = init_params(k_p, d_in, layer_sizes)

    # Primary small check (B = 2, single full-extent block).
    B = 2
    x = jax.random.normal(k_x, (B, d_in), jnp.float32)
    y = jax.block_until_ready(dnn_forward(x, params))
    y_ref = dnn_reference(x, params)
    assert y.shape == (B,)
    assert jnp.allclose(y, y_ref, atol=2e-3, rtol=2e-3), (y, y_ref)

    # Multi-tile check (ragged last block, no wrapper-side padding of x).
    B2 = 300
    x2 = jax.random.normal(k_x2, (B2, d_in), jnp.float32)
    y2 = jax.block_until_ready(dnn_forward(x2, params))
    y2_ref = dnn_reference(x2, params)
    assert y2.shape == (B2,)
    assert jnp.allclose(y2, y2_ref, atol=2e-3, rtol=2e-3)

    print("KERNEL_OK")
</pallas_src>

<mosaic_0001>
module attributes {stable_mosaic.version = 11 : i64} {
  func.func @dnn_kernel(%arg0: i32, %arg1: memref<2x772xf32, #tpu.memory_space<vmem>>, %arg2: memref<772x32xbf16, #tpu.memory_space<vmem>>, %arg3: memref<1x32xf32, #tpu.memory_space<vmem>>, %arg4: memref<32x32xf32, #tpu.memory_space<vmem>>, %arg5: memref<1x32xf32, #tpu.memory_space<vmem>>, %arg6: memref<1x32xf32, #tpu.memory_space<vmem>>, %arg7: memref<1x1xf32, #tpu.memory_space<vmem>>, %arg8: memref<1x2xf32, #tpu.memory_space<vmem>>) attributes {dimension_semantics = [#tpu.dimension_semantics<parallel>], iteration_bounds = array<i64: 1>, scalar_prefetch = 0 : i64, scratch_operands = 0 : i64, tpu.core_type = #tpu.core_type<tc>, window_params = [{transform_indices = @transform_0, window_bounds = array<i64: 2, 772>}, {pipeline_mode = #tpu.pipeline_mode<synchronous>, transform_indices = @transform_1, window_bounds = array<i64: 772, 32>}, {pipeline_mode = #tpu.pipeline_mode<synchronous>, transform_indices = @transform_2, window_bounds = array<i64: 1, 32>}, {pipeline_mode = #tpu.pipeline_mode<synchronous>, transform_indices = @transform_3, window_bounds = array<i64: 32, 32>}, {pipeline_mode = #tpu.pipeline_mode<synchronous>, transform_indices = @transform_4, window_bounds = array<i64: 1, 32>}, {pipeline_mode = #tpu.pipeline_mode<synchronous>, transform_indices = @transform_5, window_bounds = array<i64: 1, 32>}, {pipeline_mode = #tpu.pipeline_mode<synchronous>, transform_indices = @transform_6, window_bounds = array<i64: 1, 1>}, {transform_indices = @transform_7, window_bounds = array<i64: 1, 2>}]} {
    %c0 = arith.constant 0 : index
    %c0_0 = arith.constant 0 : index
    %0 = vector.load %arg1[%c0, %c0_0] : memref<2x772xf32, #tpu.memory_space<vmem>>, vector<2x772xf32>
    %1 = arith.truncf %0 : vector<2x772xf32> to vector<2x772xbf16>
    %c0_1 = arith.constant 0 : index
    %c0_2 = arith.constant 0 : index
    %2 = vector.load %arg2[%c0_1, %c0_2] : memref<772x32xbf16, #tpu.memory_space<vmem>>, vector<772x32xbf16>
    %cst = arith.constant dense<0.000000e+00> : vector<2x32xf32>
    %3 = tpu.matmul %1, %2, %cst {dimension_numbers = #tpu.dot_dimension_numbers<[1], [0], [0], [1], [0, 0, 1, 1], [], []>} : vector<2x772xbf16>, vector<772x32xbf16>, vector<2x32xf32> -> vector<2x32xf32>
    %c0_3 = arith.constant 0 : index
    %c0_4 = arith.constant 0 : index
    %4 = vector.load %arg3[%c0_3, %c0_4] : memref<1x32xf32, #tpu.memory_space<vmem>>, vector<1x32xf32>
    %5 = vector.broadcast %4 : vector<1x32xf32> to vector<2x32xf32>
    %6 = arith.addf %3, %5 : vector<2x32xf32>
    %cst_5 = arith.constant 0.000000e+00 : f32
    %7 = vector.broadcast %cst_5 : f32 to vector<2x32xf32>
    %8 = arith.maximumf %6, %7 : vector<2x32xf32>
    %c0_6 = arith.constant 0 : index
    %c0_7 = arith.constant 0 : index
    %9 = vector.load %arg4[%c0_6, %c0_7] : memref<32x32xf32, #tpu.memory_space<vmem>>, vector<32x32xf32>
    %cst_8 = arith.constant dense<0.000000e+00> : vector<2x32xf32>
    %10 = tpu.matmul %8, %9, %cst_8 {dimension_numbers = #tpu.dot_dimension_numbers<[1], [0], [0], [1], [0, 0, 1, 1], [], []>} : vector<2x32xf32>, vector<32x32xf32>, vector<2x32xf32> -> vector<2x32xf32>
    %c0_9 = arith.constant 0 : index
    %c0_10 = arith.constant 0 : index
    %11 = vector.load %arg5[%c0_9, %c0_10] : memref<1x32xf32, #tpu.memory_space<vmem>>, vector<1x32xf32>
    %12 = vector.broadcast %11 : vector<1x32xf32> to vector<2x32xf32>
    %13 = arith.addf %10, %12 : vector<2x32xf32>
    %cst_11 = arith.constant 0.000000e+00 : f32
    %14 = vector.broadcast %cst_11 : f32 to vector<2x32xf32>
    %15 = arith.maximumf %13, %14 : vector<2x32xf32>
    %c0_12 = arith.constant 0 : index
    %c0_13 = arith.constant 0 : index
    %16 = vector.load %arg6[%c0_12, %c0_13] : memref<1x32xf32, #tpu.memory_space<vmem>>, vector<1x32xf32>
    "tpu.trace_start"() <{level = 10 : i32, message = "oh,bh->ob"}> : () -> ()
    %cst_14 = arith.constant dense<0.000000e+00> : vector<1x2xf32>
    %17 = tpu.matmul %16, %15, %cst_14 {dimension_numbers = #tpu.dot_dimension_numbers<[1], [1], [0], [0], [0, 0, 1, 0], [], []>} : vector<1x32xf32>, vector<2x32xf32>, vector<1x2xf32> -> vector<1x2xf32>
    "tpu.trace_stop"() : () -> ()
    %c0_15 = arith.constant 0 : index
    %c0_16 = arith.constant 0 : index
    %18 = vector.load %arg7[%c0_15, %c0_16] : memref<1x1xf32, #tpu.memory_space<vmem>>, vector<1x1xf32>
    %19 = vector.broadcast %18 : vector<1x1xf32> to vector<1x2xf32>
    %20 = arith.addf %17, %19 : vector<1x2xf32>
    %c0_17 = arith.constant 0 : index
    %c0_18 = arith.constant 0 : index
    %21 = vector.load %arg8[%c0_17, %c0_18] : memref<1x2xf32, #tpu.memory_space<vmem>>, vector<1x2xf32>
    tpu.vector_store %arg8[%c0_17, %c0_18], %20 {strides = array<i32>} : memref<1x2xf32, #tpu.memory_space<vmem>>, vector<1x2xf32>,
    return
  }
  func.func @transform_0(%arg0: i32) -> (i32, i32) {
    %c0_i32 = arith.constant 0 : i32
    %c0_i32_0 = arith.constant 0 : i32
    return %arg0, %c0_i32 : i32, i32
  }
  func.func @transform_1(%arg0: i32) -> (i32, i32) {
    %c0_i32 = arith.constant 0 : i32
    %c0_i32_0 = arith.constant 0 : i32
    %c0_i32_1 = arith.constant 0 : i32
    return %c0_i32, %c0_i32_0 : i32, i32
  }
  func.func @transform_2(%arg0: i32) -> (i32, i32) {
    %c0_i32 = arith.constant 0 : i32
    %c0_i32_0 = arith.constant 0 : i32
    %c0_i32_1 = arith.constant 0 : i32
    return %c0_i32, %c0_i32_0 : i32, i32
  }
  func.func @transform_3(%arg0: i32) -> (i32, i32) {
    %c0_i32 = arith.constant 0 : i32
    %c0_i32_0 = arith.constant 0 : i32
    %c0_i32_1 = arith.constant 0 : i32
    return %c0_i32, %c0_i32_0 : i32, i32
  }
  func.func @transform_4(%arg0: i32) -> (i32, i32) {
    %c0_i32 = arith.constant 0 : i32
    %c0_i32_0 = arith.constant 0 : i32
    %c0_i32_1 = arith.constant 0 : i32
    return %c0_i32, %c0_i32_0 : i32, i32
  }
  func.func @transform_5(%arg0: i32) -> (i32, i32) {
    %c0_i32 = arith.constant 0 : i32
    %c0_i32_0 = arith.constant 0 : i32
    %c0_i32_1 = arith.constant 0 : i32
    return %c0_i32, %c0_i32_0 : i32, i32
  }
  func.func @transform_6(%arg0: i32) -> (i32, i32) {
    %c0_i32 = arith.constant 0 : i32
    %c0_i32_0 = arith.constant 0 : i32
    %c0_i32_1 = arith.constant 0 : i32
    return %c0_i32, %c0_i32_0 : i32, i32
  }
  func.func @transform_7(%arg0: i32) -> (i32, i32) {
    %c0_i32 = arith.constant 0 : i32
    %c0_i32_0 = arith.constant 0 : i32
    return %c0_i32, %arg0 : i32, i32
  }
}

</mosaic_0001>

<llo_original>
// kernel: tpu_custom_call.1
$region0: #{tpu_custom_call.1}
  #allocation0 [shape = 'u32[]', space=smem, size = 0x4, offset = 0x4, fixed_abs, tag = 'smem constant byte address 0x4 - core index']
  #allocation1 [shape = 'u32[144,128]{1,0:T(1,128)}', space=vmem, size = 0x12000, scoped, tag = 'internal scratch']
  #allocation2 [shape = 'f32[1,1]{1,0:T(1,128)S(1)}', space=vmem, size = 0x200, scoped, tag = 'scoped memory for tpu_custom_call.1']
  %s0 = inlined_call_operand.vmem [shape: f32[2,772], index: 0, kind: input, shape index: {}]
  %s1 = inlined_call_operand.vmem [shape: bf16[772,32], index: 1, kind: input, shape index: {}]
  %s2 = inlined_call_operand.vmem [shape: f32[1,32], index: 2, kind: input, shape index: {}]
  %s3 = inlined_call_operand.vmem [shape: f32[32,32], index: 3, kind: input, shape index: {}]
  %s4 = inlined_call_operand.vmem [shape: f32[1,32], index: 4, kind: input, shape index: {}]
  %s5 = inlined_call_operand.vmem [shape: f32[1,32], index: 5, kind: input, shape index: {}]
  %s6 = inlined_call_operand.<no memory space> [shape: f32[1,1], index: 6, kind: input, shape index: {}]
  %s7 = inlined_call_operand.hbm [shape: f32[1,2], index: 7, kind: output, shape index: {}]
  %s8 = sld [smem:[#allocation0]]
  $region38: #{tpu_custom_call.1} parent=0
    _
  %s10 = ssub.s32 1, %s8
  %s11 = scalar_select 0, %s10, %s8
  %v12 = vstv %s6
  %13 = vst [vmem:[#allocation2] sm:$0x1] %v12
  $region1: #{tpu_custom_call.1} parent=0
    #allocation3 [shape = 'u8[512]{0}', space=vmem, size = 0x400, scoped, tag = 'output window, operand 0, single buffered']
    #allocation4 [shape = 's32[1]{0}', space=sflag, size = 0x4, scoped, tag = 'scoped memory for tpu_custom_call.1']
    %14 = vsyncpa [#allocation4], 0
    // Predicated region
    $region2: #{tpu_custom_call.1} parent=1 // pred_check
      _
    $region3: #{tpu_custom_call.1} parent=1 // pred_check_branch
      %16 = sbr.rel (0) target = $region5
    $region4: #{tpu_custom_call.1} parent=1 // pred_region
      _
    $region5: #{tpu_custom_call.1} parent=1 // pred_fallthru
      _
    // Predicated region
    $region6: #{tpu_custom_call.1} parent=1 // pred_check
      _
    $region7: #{tpu_custom_call.1} parent=1 // pred_check_branch
      %18 = sbr.rel (0) target = $region9
    $region8: #{tpu_custom_call.1} parent=1 // pred_region
      _
    $region9: #{tpu_custom_call.1} parent=1 // pred_fallthru
      _
    // Predicated region
    $region10: #{tpu_custom_call.1} parent=1 // pred_check
      _
    $region11: #{tpu_custom_call.1} parent=1 // pred_check_branch
      %20 = sbr.rel (0) target = $region13
    $region12: #{tpu_custom_call.1} parent=1 // pred_region
      _
    $region13: #{tpu_custom_call.1} parent=1 // pred_fallthru
      _
    // Predicated region
    $region14: #{tpu_custom_call.1} parent=1 // pred_check
      _
    $region15: #{tpu_custom_call.1} parent=1 // pred_check_branch
      %22 = sbr.rel (0) target = $region17
    $region16: #{tpu_custom_call.1} parent=1 // pred_region
      _
    $region17: #{tpu_custom_call.1} parent=1 // pred_fallthru
      _
    // Predicated region
    $region18: #{tpu_custom_call.1} parent=1 // pred_check
      _
    $region19: #{tpu_custom_call.1} parent=1 // pred_check_branch
      %24 = sbr.rel (0) target = $region21
    $region20: #{tpu_custom_call.1} parent=1 // pred_region
      _
    $region21: #{tpu_custom_call.1} parent=1 // pred_fallthru
      _
    // Predicated region
    $region22: #{tpu_custom_call.1} parent=1 // pred_check
      _
    $region23: #{tpu_custom_call.1} parent=1 // pred_check_branch
      %26 = sbr.rel (0) target = $region25
    $region24: #{tpu_custom_call.1} parent=1 // pred_region
      _
    $region25: #{tpu_custom_call.1} parent=1 // pred_fallthru
      _
    // Predicated region
    $region26: #{tpu_custom_call.1} parent=1 // pred_check
      _
    $region27: #{tpu_custom_call.1} parent=1 // pred_check_branch
      %28 = sbr.rel (0) target = $region29
    $region28: #{tpu_custom_call.1} parent=1 // pred_region
      _
    $region29: #{tpu_custom_call.1} parent=1 // pred_fallthru
      _
    %v30 = vld [vmem:[%s0] sm:$0xff]
    %v31 = vld [vmem:[%s0 + $0x8] sm:$0x3f]
    %v34 = vcombine.high %v30, %v30
    %v36 = vunpack.c.l.s4 1983009808
    %v37 = vunpack.c.0.s8 %v36
    %v38 = vlaneseq
    %v39 = vshrl.u32 %v38, 7
    %v40 = vsub.s32 %v37, %v39
    %v41 = vrot.slane %v30, %v40
    %v43 = vunpack.c.l.s4 1983009808
    %v44 = vunpack.c.0.s8 %v43
    %v45 = vlaneseq
    %v46 = vshrl.u32 %v45, 7
    %v47 = vsub.s32 %v44, %v46
    %v48 = vrot.slane %v34, %v47
    %v49 = vcombine.high %v41, %v41
    %v50 = vcombine.high %v48, %v48
    %v51 = vcombine.high %v31, %v31
    %v53 = vunpack.c.l.s4 1983009808
    %v54 = vunpack.c.0.s8 %v53
    %v55 = vlaneseq
    %v56 = vshrl.u32 %v55, 7
    %v57 = vsub.s32 %v54, %v56
    %v58 = vrot.slane %v31, %v57
    %v60 = vunpack.c.l.s4 1983009808
    %v61 = vunpack.c.0.s8 %v60
    %v62 = vlaneseq
    %v63 = vshrl.u32 %v62, 7
    %v64 = vsub.s32 %v61, %v63
    %v65 = vrot.slane %v51, %v64
    %v66 = vcombine.high %v58, %v58
    %v74 = vpack.c.bf16 %v41, %v41
    %v75 = vpack.c.bf16 %v49, %v49
    %v76 = vpack.c.bf16 %v48, %v48
    %v77 = vpack.c.bf16 %v50, %v50
    %v78 = vpack.c.bf16 %v58, %v58
    %v79 = vpack.c.bf16 %v66, %v66
    %v80 = vpack.c.bf16 %v65, %v65
    %v81 = vld [vmem:[%s1] sm:$0xf]
    %v82 = vld [vmem:[%s1 + $0x4] sm:$0xf]
    %v83 = vld [vmem:[%s1 + $0x8] sm:$0xf]
    %v84 = vld [vmem:[%s1 + $0xc] sm:$0xf]
    %v85 = vld [vmem:[%s1 + $0x10] sm:$0xf]
    %v86 = vld [vmem:[%s1 + $0x14] sm:$0xf]
    %v87 = vld [vmem:[%s1 + $0x18] sm:$0xf]
    %v88 = vld [vmem:[%s1 + $0x1c] sm:$0xf]
    %v89 = vld [vmem:[%s1 + $0x20] sm:$0xf]
    %v90 = vld [vmem:[%s1 + $0x24] sm:$0xf]
    %v91 = vld [vmem:[%s1 + $0x28] sm:$0xf]
    %v92 = vld [vmem:[%s1 + $0x2c] sm:$0xf]
    %v93 = vld [vmem:[%s1 + $0x30] sm:$0xf]
    %v94 = vld [vmem:[%s1 + $0x34] sm:$0xf]
    %v95 = vld [vmem:[%s1 + $0x38] sm:$0xf]
    %v96 = vld [vmem:[%s1 + $0x3c] sm:$0xf]
    %v97 = vld [vmem:[%s1 + $0x40] sm:$0xf]
    %v98 = vld [vmem:[%s1 + $0x44] sm:$0xf]
    %v99 = vld [vmem:[%s1 + $0x48] sm:$0xf]
    %v100 = vld [vmem:[%s1 + $0x4c] sm:$0xf]
    %v101 = vld [vmem:[%s1 + $0x50] sm:$0xf]
    %v102 = vld [vmem:[%s1 + $0x54] sm:$0xf]
    %v103 = vld [vmem:[%s1 + $0x58] sm:$0xf]
    %v104 = vld [vmem:[%s1 + $0x5c] sm:$0xf]
    %v105 = vld [vmem:[%s1 + $0x60] sm:$0xf]
    %v106 = vld [vmem:[%s1 + $0x64] sm:$0xf]
    %v107 = vld [vmem:[%s1 + $0x68] sm:$0xf]
    %v108 = vld [vmem:[%s1 + $0x6c] sm:$0xf]
    %v109 = vld [vmem:[%s1 + $0x70] sm:$0xf]
    %v110 = vld [vmem:[%s1 + $0x74] sm:$0xf]
    %v111 = vld [vmem:[%s1 + $0x78] sm:$0xf]
    %v112 = vld [vmem:[%s1 + $0x7c] sm:$0xf]
    %v113 = vld [vmem:[%s1 + $0x80] sm:$0xf]
    %v114 = vld [vmem:[%s1 + $0x84] sm:$0xf]
    %v115 = vld [vmem:[%s1 + $0x88] sm:$0xf]
    %v116 = vld [vmem:[%s1 + $0x8c] sm:$0xf]
    %v117 = vld [vmem:[%s1 + $0x90] sm:$0xf]
    %v118 = vld [vmem:[%s1 + $0x94] sm:$0xf]
    %v119 = vld [vmem:[%s1 + $0x98] sm:$0xf]
    %v120 = vld [vmem:[%s1 + $0x9c] sm:$0xf]
    %v121 = vld [vmem:[%s1 + $0xa0] sm:$0xf]
    %v122 = vld [vmem:[%s1 + $0xa4] sm:$0xf]
    %v123 = vld [vmem:[%s1 + $0xa8] sm:$0xf]
    %v124 = vld [vmem:[%s1 + $0xac] sm:$0xf]
    %v125 = vld [vmem:[%s1 + $0xb0] sm:$0xf]
    %v126 = vld [vmem:[%s1 + $0xb4] sm:$0xf]
    %v127 = vld [vmem:[%s1 + $0xb8] sm:$0xf]
    %v128 = vld [vmem:[%s1 + $0xbc] sm:$0xf]
    %v129 = vld [vmem:[%s1 + $0xc0] sm:$0xf]
    %v130 = vld [vmem:[%s1 + $0xc4] sm:$0xf]
    %v131 = vld [vmem:[%s1 + $0xc8] sm:$0xf]
    %v132 = vld [vmem:[%s1 + $0xcc] sm:$0xf]
    %v133 = vld [vmem:[%s1 + $0xd0] sm:$0xf]
    %v134 = vld [vmem:[%s1 + $0xd4] sm:$0xf]
    %v135 = vld [vmem:[%s1 + $0xd8] sm:$0xf]
    %v136 = vld [vmem:[%s1 + $0xdc] sm:$0xf]
    %v137 = vld [vmem:[%s1 + $0xe0] sm:$0xf]
    %v138 = vld [vmem:[%s1 + $0xe4] sm:$0xf]
    %v139 = vld [vmem:[%s1 + $0xe8] sm:$0xf]
    %v140 = vld [vmem:[%s1 + $0xec] sm:$0xf]
    %v141 = vld [vmem:[%s1 + $0xf0] sm:$0xf]
    %v142 = vld [vmem:[%s1 + $0xf4] sm:$0xf]
    %v143 = vld [vmem:[%s1 + $0xf8] sm:$0xf]
    %v144 = vld [vmem:[%s1 + $0xfc] sm:$0xf]
    %v145 = vld [vmem:[%s1 + $0x100] sm:$0xf]
    %v146 = vld [vmem:[%s1 + $0x104] sm:$0xf]
    %v147 = vld [vmem:[%s1 + $0x108] sm:$0xf]
    %v148 = vld [vmem:[%s1 + $0x10c] sm:$0xf]
    %v149 = vld [vmem:[%s1 + $0x110] sm:$0xf]
    %v150 = vld [vmem:[%s1 + $0x114] sm:$0xf]
    %v151 = vld [vmem:[%s1 + $0x118] sm:$0xf]
    %v152 = vld [vmem:[%s1 + $0x11c] sm:$0xf]
    %v153 = vld [vmem:[%s1 + $0x120] sm:$0xf]
    %v154 = vld [vmem:[%s1 + $0x124] sm:$0xf]
    %v155 = vld [vmem:[%s1 + $0x128] sm:$0xf]
    %v156 = vld [vmem:[%s1 + $0x12c] sm:$0xf]
    %v157 = vld [vmem:[%s1 + $0x130] sm:$0xf]
    %v158 = vld [vmem:[%s1 + $0x134] sm:$0xf]
    %v159 = vld [vmem:[%s1 + $0x138] sm:$0xf]
    %v160 = vld [vmem:[%s1 + $0x13c] sm:$0xf]
    %v161 = vld [vmem:[%s1 + $0x140] sm:$0xf]
    %v162 = vld [vmem:[%s1 + $0x144] sm:$0xf]
    %v163 = vld [vmem:[%s1 + $0x148] sm:$0xf]
    %v164 = vld [vmem:[%s1 + $0x14c] sm:$0xf]
    %v165 = vld [vmem:[%s1 + $0x150] sm:$0xf]
    %v166 = vld [vmem:[%s1 + $0x154] sm:$0xf]
    %v167 = vld [vmem:[%s1 + $0x158] sm:$0xf]
    %v168 = vld [vmem:[%s1 + $0x15c] sm:$0xf]
    %v169 = vld [vmem:[%s1 + $0x160] sm:$0xf]
    %v170 = vld [vmem:[%s1 + $0x164] sm:$0xf]
    %v171 = vld [vmem:[%s1 + $0x168] sm:$0xf]
    %v172 = vld [vmem:[%s1 + $0x16c] sm:$0xf]
    %v173 = vld [vmem:[%s1 + $0x170] sm:$0xf]
    %v174 = vld [vmem:[%s1 + $0x174] sm:$0xf]
    %v175 = vld [vmem:[%s1 + $0x178] sm:$0xf]
    %v176 = vld [vmem:[%s1 + $0x17c] sm:$0xf]
    %v177 = vld [vmem:[%s1 + $0x180] sm:$0x3]
    %v178 = vld [vmem:[%s2] sm:$0x1]
    %v180 = vlaneseq
    %v181 = vshrl.u32 %v180, 7
    %v182 = vsub.s32 0, %v181
    %v183 = vrot.slane %v178, %v182
    %v282 = vunpack.c.l.b16 %v81
    %v283 = vunpack.c.l.b16 %v82
    %v284 = vunpack.c.l.b16 %v83
    %v285 = vunpack.c.l.b16 %v84
    %v286 = vunpack.c.l.b16 %v85
    %v287 = vunpack.c.l.b16 %v86
    %v288 = vunpack.c.l.b16 %v87
    %v289 = vunpack.c.l.b16 %v88
    %v290 = vunpack.c.l.b16 %v89
    %v291 = vunpack.c.l.b16 %v90
    %v292 = vunpack.c.l.b16 %v91
    %v293 = vunpack.c.l.b16 %v92
    %v294 = vunpack.c.l.b16 %v93
    %v295 = vunpack.c.l.b16 %v94
    %v296 = vunpack.c.l.b16 %v95
    %v297 = vunpack.c.l.b16 %v96
    %v298 = vunpack.c.l.b16 %v97
    %v299 = vunpack.c.l.b16 %v98
    %v300 = vunpack.c.l.b16 %v99
    %v301 = vunpack.c.l.b16 %v100
    %v302 = vunpack.c.l.b16 %v101
    %v303 = vunpack.c.l.b16 %v102
    %v304 = vunpack.c.l.b16 %v103
    %v305 = vunpack.c.l.b16 %v104
    %v306 = vunpack.c.l.b16 %v105
    %v307 = vunpack.c.l.b16 %v106
    %v308 = vunpack.c.l.b16 %v107
    %v309 = vunpack.c.l.b16 %v108
    %v310 = vunpack.c.l.b16 %v109
    %v311 = vunpack.c.l.b16 %v110
    %v312 = vunpack.c.l.b16 %v111
    %v313 = vunpack.c.l.b16 %v112
    %v314 = vunpack.c.l.b16 %v113
    %v315 = vunpack.c.l.b16 %v114
    %v316 = vunpack.c.l.b16 %v115
    %v317 = vunpack.c.l.b16 %v116
    %v318 = vunpack.c.l.b16 %v117
    %v319 = vunpack.c.l.b16 %v118
    %v320 = vunpack.c.l.b16 %v119
    %v321 = vunpack.c.l.b16 %v120
    %v322 = vunpack.c.l.b16 %v121
    %v323 = vunpack.c.l.b16 %v122
    %v324 = vunpack.c.l.b16 %v123
    %v325 = vunpack.c.l.b16 %v124
    %v326 = vunpack.c.l.b16 %v125
    %v327 = vunpack.c.l.b16 %v126
    %v328 = vunpack.c.l.b16 %v127
    %v329 = vunpack.c.l.b16 %v128
    %v330 = vunpack.c.l.b16 %v129
    %v331 = vunpack.c.l.b16 %v130
    %v332 = vunpack.c.l.b16 %v131
    %v333 = vunpack.c.l.b16 %v132
    %v334 = vunpack.c.l.b16 %v133
    %v335 = vunpack.c.l.b16 %v134
    %v336 = vunpack.c.l.b16 %v135
    %v337 = vunpack.c.l.b16 %v136
    %v338 = vunpack.c.l.b16 %v137
    %v339 = vunpack.c.l.b16 %v138
    %v340 = vunpack.c.l.b16 %v139
    %v341 = vunpack.c.l.b16 %v140
    %v342 = vunpack.c.l.b16 %v141
    %v343 = vunpack.c.l.b16 %v142
    %v344 = vunpack.c.l.b16 %v143
    %v345 = vunpack.c.l.b16 %v144
    %v346 = vunpack.c.l.b16 %v145
    %v347 = vunpack.c.l.b16 %v146
    %v348 = vunpack.c.l.b16 %v147
    %v349 = vunpack.c.l.b16 %v148
    %v350 = vunpack.c.l.b16 %v149
    %v351 = vunpack.c.l.b16 %v150
    %v352 = vunpack.c.l.b16 %v151
    %v353 = vunpack.c.l.b16 %v152
    %v354 = vunpack.c.l.b16 %v153
    %v355 = vunpack.c.l.b16 %v154
    %v356 = vunpack.c.l.b16 %v155
    %v357 = vunpack.c.l.b16 %v156
    %v358 = vunpack.c.l.b16 %v157
    %v359 = vunpack.c.l.b16 %v158
    %v360 = vunpack.c.l.b16 %v159
    %v361 = vunpack.c.l.b16 %v160
    %v362 = vunpack.c.l.b16 %v161
    %v363 = vunpack.c.l.b16 %v162
    %v364 = vunpack.c.l.b16 %v163
    %v365 = vunpack.c.l.b16 %v164
    %v366 = vunpack.c.l.b16 %v165
    %v367 = vunpack.c.l.b16 %v166
    %v368 = vunpack.c.l.b16 %v167
    %v369 = vunpack.c.l.b16 %v168
    %v370 = vunpack.c.l.b16 %v169
    %v371 = vunpack.c.l.b16 %v170
    %v372 = vunpack.c.l.b16 %v171
    %v373 = vunpack.c.l.b16 %v172
    %v374 = vunpack.c.l.b16 %v173
    %v375 = vunpack.c.l.b16 %v174
    %v376 = vunpack.c.l.b16 %v175
    %v377 = vunpack.c.l.b16 %v176
    %v378 = vunpack.c.l.b16 %v177
    %v379 = vpack.c.b16 %v283, %v282
    %v380 = vpack.c.b16 %v285, %v284
    %v381 = vpack.c.b16 %v287, %v286
    %v382 = vpack.c.b16 %v289, %v288
    %v383 = vpack.c.b16 %v291, %v290
    %v384 = vpack.c.b16 %v293, %v292
    %v385 = vpack.c.b16 %v295, %v294
    %v386 = vpack.c.b16 %v297, %v296
    %v387 = vpack.c.b16 %v299, %v298
    %v388 = vpack.c.b16 %v301, %v300
    %v389 = vpack.c.b16 %v303, %v302
    %v390 = vpack.c.b16 %v305, %v304
    %v391 = vpack.c.b16 %v307, %v306
    %v392 = vpack.c.b16 %v309, %v308
    %v393 = vpack.c.b16 %v311, %v310
    %v394 = vpack.c.b16 %v313, %v312
    %v395 = vpack.c.b16 %v315, %v314
    %v396 = vpack.c.b16 %v317, %v316
    %v397 = vpack.c.b16 %v319, %v318
    %v398 = vpack.c.b16 %v321, %v320
    %v399 = vpack.c.b16 %v323, %v322
    %v400 = vpack.c.b16 %v325, %v324
    %v401 = vpack.c.b16 %v327, %v326
    %v402 = vpack.c.b16 %v329, %v328
    %v403 = vpack.c.b16 %v331, %v330
    %v404 = vpack.c.b16 %v333, %v332
    %v405 = vpack.c.b16 %v335, %v334
    %v406 = vpack.c.b16 %v337, %v336
    %v407 = vpack.c.b16 %v339, %v338
    %v408 = vpack.c.b16 %v341, %v340
    %v409 = vpack.c.b16 %v343, %v342
    %v410 = vpack.c.b16 %v345, %v344
    %v411 = vpack.c.b16 %v347, %v346
    %v412 = vpack.c.b16 %v349, %v348
    %v413 = vpack.c.b16 %v351, %v350
    %v414 = vpack.c.b16 %v353, %v352
    %v415 = vpack.c.b16 %v355, %v354
    %v416 = vpack.c.b16 %v357, %v356
    %v417 = vpack.c.b16 %v359, %v358
    %v418 = vpack.c.b16 %v361, %v360
    %v419 = vpack.c.b16 %v363, %v362
    %v420 = vpack.c.b16 %v365, %v364
    %v421 = vpack.c.b16 %v367, %v366
    %v422 = vpack.c.b16 %v369, %v368
    %v423 = vpack.c.b16 %v371, %v370
    %v424 = vpack.c.b16 %v373, %v372
    %v425 = vpack.c.b16 %v375, %v374
    %v426 = vpack.c.b16 %v377, %v376
    %v427 = vpack.c.b16 %v378, %v378
    %vm476 = vcmask 31744
    %v478 = vsel %vm476, %v80, 0
    %vm480 = vcmask 1041408
    %v482 = vsel %vm480, %v427, 0
    %484 = vmatprep.subr.bf16.mxu0 0
    %485 = vmatpush1.bf16.msra.mxu0 %v379
    %486 = vmatprep.subr.bf16.mxu0 0
    %487 = vmatpush1.bf16.msra.mxu0 %v380
    %488 = vmatprep.subr.bf16.mxu0 0
    %489 = vmatpush1.bf16.msra.mxu0 %v381
    %490 = vmatprep.subr.bf16.mxu0 0
    %491 = vmatpush1.bf16.msra.mxu0 %v382
    %492 = vmatprep.subr.bf16.mxu0 0
    %493 = vmatpush1.bf16.msra.mxu0 %v383
    %494 = vmatprep.subr.bf16.mxu0 0
    %495 = vmatpush1.bf16.msra.mxu0 %v384
    %496 = vmatprep.subr.bf16.mxu0 0
    %497 = vmatpush1.bf16.msra.mxu0 %v385
    %498 = vmatprep.subr.bf16.mxu0 0
    %499 = vmatpush1.bf16.msra.mxu0 %v386
    %500 = vmatprep.subr.bf16.mxu0 0
    %501 = vmatpush1.bf16.msra.mxu0 %v387
    %502 = vmatprep.subr.bf16.mxu0 0
    %503 = vmatpush1.bf16.msra.mxu0 %v388
    %504 = vmatprep.subr.bf16.mxu0 0
    %505 = vmatpush1.bf16.msra.mxu0 %v389
    %506 = vmatprep.subr.bf16.mxu0 0
    %507 = vmatpush1.bf16.msra.mxu0 %v390
    %508 = vmatprep.subr.bf16.mxu0 0
    %509 = vmatpush1.bf16.msra.mxu0 %v391
    %510 = vmatprep.subr.bf16.mxu0 0
    %511 = vmatpush1.bf16.msra.mxu0 %v392
    %512 = vmatprep.subr.bf16.mxu0 0
    %513 = vmatpush1.bf16.msra.mxu0 %v393
    %514 = vmatprep.subr.bf16.mxu0 0
    %515 = vmatpush1.bf16.msra.mxu0 %v394
    %516 = vmatprep.mubr.bf16.mxu0 %v75
    %517 = vmatmul.mubr.bf16.gmra.mrb[0].mxu0 %v74
    %v518 = vpop.f32.mrb[0].mxu0
    %v519 = vadd.f32 %v183, %v518
    %v520 = vpop.f32.mrb[0].mxu0
    %v521 = vpop.f32.mrb[0].mxu0
    %v522 = vpop.f32.mrb[0].mxu0
    %523 = vdwg.mxu0
    %524 = vmatprep.subr.bf16.mxu0 0
    %525 = vmatpush1.bf16.msra.mxu0 %v395
    %526 = vmatprep.subr.bf16.mxu0 0
    %527 = vmatpush1.bf16.msra.mxu0 %v396
    %528 = vmatprep.subr.bf16.mxu0 0
    %529 = vmatpush1.bf16.msra.mxu0 %v397
    %530 = vmatprep.subr.bf16.mxu0 0
    %531 = vmatpush1.bf16.msra.mxu0 %v398
    %532 = vmatprep.subr.bf16.mxu0 0
    %533 = vmatpush1.bf16.msra.mxu0 %v399
    %534 = vmatprep.subr.bf16.mxu0 0
    %535 = vmatpush1.bf16.msra.mxu0 %v400
    %536 = vmatprep.subr.bf16.mxu0 0
    %537 = vmatpush1.bf16.msra.mxu0 %v401
    %538 = vmatprep.subr.bf16.mxu0 0
    %539 = vmatpush1.bf16.msra.mxu0 %v402
    %540 = vmatprep.subr.bf16.mxu0 0
    %541 = vmatpush1.bf16.msra.mxu0 %v403
    %542 = vmatprep.subr.bf16.mxu0 0
    %543 = vmatpush1.bf16.msra.mxu0 %v404
    %544 = vmatprep.subr.bf16.mxu0 0
    %545 = vmatpush1.bf16.msra.mxu0 %v405
    %546 = vmatprep.subr.bf16.mxu0 0
    %547 = vmatpush1.bf16.msra.mxu0 %v406
    %548 = vmatprep.subr.bf16.mxu0 0
    %549 = vmatpush1.bf16.msra.mxu0 %v407
    %550 = vmatprep.subr.bf16.mxu0 0
    %551 = vmatpush1.bf16.msra.mxu0 %v408
    %552 = vmatprep.subr.bf16.mxu0 0
    %553 = vmatpush1.bf16.msra.mxu0 %v409
    %554 = vmatprep.subr.bf16.mxu0 0
    %555 = vmatpush1.bf16.msra.mxu0 %v410
    %556 = vmatprep.mubr.bf16.mxu0 %v77
    %557 = vmatmul.mubr.bf16.gmra.mrb[0].mxu0 %v76
    %v558 = vpop.f32.mrb[0].mxu0
    %v559 = vadd.f32 %v519, %v558
    %v560 = vpop.f32.mrb[0].mxu0
    %v561 = vpop.f32.mrb[0].mxu0
    %v562 = vpop.f32.mrb[0].mxu0
    %563 = vdwg.mxu0
    %564 = vmatprep.subr.bf16.mxu0 0
    %565 = vmatpush1.bf16.msra.mxu0 %v411
    %566 = vmatprep.subr.bf16.mxu0 0
    %567 = vmatpush1.bf16.msra.mxu0 %v412
    %568 = vmatprep.subr.bf16.mxu0 0
    %569 = vmatpush1.bf16.msra.mxu0 %v413
    %570 = vmatprep.subr.bf16.mxu0 0
    %571 = vmatpush1.bf16.msra.mxu0 %v414
    %572 = vmatprep.subr.bf16.mxu0 0
    %573 = vmatpush1.bf16.msra.mxu0 %v415
    %574 = vmatprep.subr.bf16.mxu0 0
    %575 = vmatpush1.bf16.msra.mxu0 %v416
    %576 = vmatprep.subr.bf16.mxu0 0
    %577 = vmatpush1.bf16.msra.mxu0 %v417
    %578 = vmatprep.subr.bf16.mxu0 0
    %579 = vmatpush1.bf16.msra.mxu0 %v418
    %580 = vmatprep.subr.bf16.mxu0 0
    %581 = vmatpush1.bf16.msra.mxu0 %v419
    %582 = vmatprep.subr.bf16.mxu0 0
    %583 = vmatpush1.bf16.msra.mxu0 %v420
    %584 = vmatprep.subr.bf16.mxu0 0
    %585 = vmatpush1.bf16.msra.mxu0 %v421
    %586 = vmatprep.subr.bf16.mxu0 0
    %587 = vmatpush1.bf16.msra.mxu0 %v422
    %588 = vmatprep.subr.bf16.mxu0 0
    %589 = vmatpush1.bf16.msra.mxu0 %v423
    %590 = vmatprep.subr.bf16.mxu0 0
    %591 = vmatpush1.bf16.msra.mxu0 %v424
    %592 = vmatprep.subr.bf16.mxu0 0
    %593 = vmatpush1.bf16.msra.mxu0 %v425
    %594 = vmatprep.subr.bf16.mxu0 0
    %595 = vmatpush1.bf16.msra.mxu0 %v426
    %596 = vmatprep.mubr.bf16.mxu0 %v79
    %597 = vmatmul.mubr.bf16.gmra.mrb[0].mxu0 %v78
    %v598 = vpop.f32.mrb[0].mxu0
    %v599 = vadd.f32 %v559, %v598
    %v600 = vpop.f32.mrb[0].mxu0
    %v601 = vpop.f32.mrb[0].mxu0
    %v602 = vpop.f32.mrb[0].mxu0
    %603 = vdwg.mxu0
    %604 = vmatprep.subr.bf16.mxu0 0
    %605 = vmatpush1.bf16.msra.mxu0 %v482
    %606 = vmatprep.subr.bf16.mxu0 0
    %607 = vmatpush1.bf16.msra.mxu0 0
    %608 = vmatprep.subr.bf16.mxu0 0
    %609 = vmatpush1.bf16.msra.mxu0 0
    %610 = vmatprep.subr.bf16.mxu0 0
    %611 = vmatpush1.bf16.msra.mxu0 0
    %612 = vmatprep.subr.bf16.mxu0 0
    %613 = vmatpush1.bf16.msra.mxu0 0
    %614 = vmatprep.subr.bf16.mxu0 0
    %615 = vmatpush1.bf16.msra.mxu0 0
    %616 = vmatprep.subr.bf16.mxu0 0
    %617 = vmatpush1.bf16.msra.mxu0 0
    %618 = vmatprep.subr.bf16.mxu0 0
    %619 = vmatpush1.bf16.msra.mxu0 0
    %620 = vmatprep.subr.bf16.mxu0 0
    %621 = vmatpush1.bf16.msra.mxu0 0
    %622 = vmatprep.subr.bf16.mxu0 0
    %623 = vmatpush1.bf16.msra.mxu0 0
    %624 = vmatprep.subr.bf16.mxu0 0
    %625 = vmatpush1.bf16.msra.mxu0 0
    %626 = vmatprep.subr.bf16.mxu0 0
    %627 = vmatpush1.bf16.msra.mxu0 0
    %628 = vmatprep.subr.bf16.mxu0 0
    %629 = vmatpush1.bf16.msra.mxu0 0
    %630 = vmatprep.subr.bf16.mxu0 0
    %631 = vmatpush1.bf16.msra.mxu0 0
    %632 = vmatprep.subr.bf16.mxu0 0
    %633 = vmatpush1.bf16.msra.mxu0 0
    %634 = vmatprep.subr.bf16.mxu0 0
    %635 = vmatpush1.bf16.msra.mxu0 0
    %636 = vmatprep.mubr.bf16.mxu0 0
    %637 = vmatmul.mubr.bf16.gmra.mrb[0].mxu0 %v478
    %v638 = vpop.f32.mrb[0].mxu0
    %v639 = vadd.f32 %v599, %v638
    %v640 = vpop.f32.mrb[0].mxu0
    %v641 = vpop.f32.mrb[0].mxu0
    %v642 = vpop.f32.mrb[0].mxu0
    %643 = vdwg.mxu0
    %v644 = vmax.f32 %v639, 0.0
    %v645 = vld [vmem:[%s3] sm:$0xff]
    %v646 = vld [vmem:[%s3 + $0x8] sm:$0xff]
    %v647 = vld [vmem:[%s3 + $0x10] sm:$0xff]
    %v648 = vld [vmem:[%s3 + $0x18] sm:$0xff]
    %v649 = vld [vmem:[%s4] sm:$0x1]
    %v651 = vlaneseq
    %v652 = vshrl.u32 %v651, 7
    %v653 = vsub.s32 0, %v652
    %v654 = vrot.slane %v649, %v653
    %vm656 = vcmask 261120
    %v658 = vsel %vm656, %v644, 0
    %660 = vmatprep.subr.mxu0 0.0
    %661 = vmatpush1.msra.mxu0 %v645
    %662 = vmatprep.subr.mxu0 0.0
    %663 = vmatpush1.msra.mxu0 %v646
    %664 = vmatprep.subr.mxu0 0.0
    %665 = vmatpush1.msra.mxu0 %v647
    %666 = vmatprep.subr.mxu0 0.0
    %667 = vmatpush1.msra.mxu0 %v648
    %668 = vmatprep.subr.mxu0 0.0
    %669 = vmatpush1.msra.mxu0 0.0
    %670 = vmatprep.subr.mxu0 0.0
    %671 = vmatpush1.msra.mxu0 0.0
    %672 = vmatprep.subr.mxu0 0.0
    %673 = vmatpush1.msra.mxu0 0.0
    %674 = vmatprep.subr.mxu0 0.0
    %675 = vmatpush1.msra.mxu0 0.0
    %676 = vmatprep.subr.mxu0 0.0
    %677 = vmatpush1.msra.mxu0 0.0
    %678 = vmatprep.subr.mxu0 0.0
    %679 = vmatpush1.msra.mxu0 0.0
    %680 = vmatprep.subr.mxu0 0.0
    %681 = vmatpush1.msra.mxu0 0.0
    %682 = vmatprep.subr.mxu0 0.0
    %683 = vmatpush1.msra.mxu0 0.0
    %684 = vmatprep.subr.mxu0 0.0
    %685 = vmatpush1.msra.mxu0 0.0
    %686 = vmatprep.subr.mxu0 0.0
    %687 = vmatpush1.msra.mxu0 0.0
    %688 = vmatprep.subr.mxu0 0.0
    %689 = vmatpush1.msra.mxu0 0.0
    %690 = vmatprep.subr.mxu0 0.0
    %691 = vmatpush1.msra.mxu0 0.0
    %692 = vmatprep.subr.mxu0 0.0
    %693 = vmatpush1.msra.mxu0 0.0
    %694 = vmatprep.subr.mxu0 0.0
    %695 = vmatpush1.msra.mxu0 0.0
    %696 = vmatprep.subr.mxu0 0.0
    %697 = vmatpush1.msra.mxu0 0.0
    %698 = vmatprep.subr.mxu0 0.0
    %699 = vmatpush1.msra.mxu0 0.0
    %700 = vmatprep.subr.mxu0 0.0
    %701 = vmatpush1.msra.mxu0 0.0
    %702 = vmatprep.subr.mxu0 0.0
    %703 = vmatpush1.msra.mxu0 0.0
    %704 = vmatprep.subr.mxu0 0.0
    %705 = vmatpush1.msra.mxu0 0.0
    %706 = vmatprep.subr.mxu0 0.0
    %707 = vmatpush1.msra.mxu0 0.0
    %708 = vmatprep.subr.mxu0 0.0
    %709 = vmatpush1.msra.mxu0 0.0
    %710 = vmatprep.subr.mxu0 0.0
    %711 = vmatpush1.msra.mxu0 0.0
    %712 = vmatprep.subr.mxu0 0.0
    %713 = vmatpush1.msra.mxu0 0.0
    %714 = vmatprep.subr.mxu0 0.0
    %715 = vmatpush1.msra.mxu0 0.0
    %716 = vmatprep.subr.mxu0 0.0
    %717 = vmatpush1.msra.mxu0 0.0
    %718 = vmatprep.subr.mxu0 0.0
    %719 = vmatpush1.msra.mxu0 0.0
    %720 = vmatprep.subr.mxu0 0.0
    %721 = vmatpush1.msra.mxu0 0.0
    %722 = vmatprep.subr.mxu0 0.0
    %723 = vmatpush1.msra.mxu0 0.0
    %724 = vmatprep.mubr.f32.mxu0 0.0
    %725 = vmatmul.mubr.f32.gmra.mrb[0].mxu0 %v658
    %v726 = vpop.f32.mrb[0].mxu0
    %v727 = vadd.f32 %v654, %v726
    %v728 = vpop.f32.mrb[0].mxu0
    %729 = vdwg.mxu0
    %v730 = vmax.f32 %v727, 0.0
    %v731 = vld [vmem:[%s5] sm:$0x1]
    %v732 = vld [vmem:[#allocation2] sm:$0x1]
    %734 = vset.pattern.permute.xlu0 0
    %735 = vperm.xlu0 %734, %v732
    %v736 = vpop.permute.xlu0 %735
    %v738 = vlaneseq
    %v739 = vshrl.u32 %v738, 7
    %v740 = vsub.s32 0, %v739
    %v741 = vrot.slane %v736, %v740
    %v743 = vsel %vm656, %v731, 0
    %v746 = vsel %vm656, %v730, 0
    %748 = vmatprep.subr.mxu0 0.0
    %749 = vmatpush1.xpose.msra.mxu0 %v746
    %750 = vmatprep.subr.mxu0 0.0
    %751 = vmatpush1.xpose.msra.mxu0 0.0
    %752 = vmatprep.subr.mxu0 0.0
    %753 = vmatpush1.xpose.msra.mxu0 0.0
    %754 = vmatprep.subr.mxu0 0.0
    %755 = vmatpush1.xpose.msra.mxu0 0.0
    %756 = vmatprep.subr.mxu0 0.0
    %757 = vmatpush1.xpose.msra.mxu0 0.0
    %758 = vmatprep.subr.mxu0 0.0
    %759 = vmatpush1.xpose.msra.mxu0 0.0
    %760 = vmatprep.subr.mxu0 0.0
    %761 = vmatpush1.xpose.msra.mxu0 0.0
    %762 = vmatprep.subr.mxu0 0.0
    %763 = vmatpush1.xpose.msra.mxu0 0.0
    %764 = vmatprep.subr.mxu0 0.0
    %765 = vmatpush1.xpose.msra.mxu0 0.0
    %766 = vmatprep.subr.mxu0 0.0
    %767 = vmatpush1.xpose.msra.mxu0 0.0
    %768 = vmatprep.subr.mxu0 0.0
    %769 = vmatpush1.xpose.msra.mxu0 0.0
    %770 = vmatprep.subr.mxu0 0.0
    %771 = vmatpush1.xpose.msra.mxu0 0.0
    %772 = vmatprep.subr.mxu0 0.0
    %773 = vmatpush1.xpose.msra.mxu0 0.0
    %774 = vmatprep.subr.mxu0 0.0
    %775 = vmatpush1.xpose.msra.mxu0 0.0
    %776 = vmatprep.subr.mxu0 0.0
    %777 = vmatpush1.xpose.msra.mxu0 0.0
    %778 = vmatprep.subr.mxu0 0.0
    %779 = vmatpush1.xpose.msra.mxu0 0.0
    %780 = vmatprep.subr.mxu0 0.0
    %781 = vmatpush1.xpose.msra.mxu0 0.0
    %782 = vmatprep.subr.mxu0 0.0
    %783 = vmatpush1.xpose.msra.mxu0 0.0
    %784 = vmatprep.subr.mxu0 0.0
    %785 = vmatpush1.xpose.msra.mxu0 0.0
    %786 = vmatprep.subr.mxu0 0.0
    %787 = vmatpush1.xpose.msra.mxu0 0.0
    %788 = vmatprep.subr.mxu0 0.0
    %789 = vmatpush1.xpose.msra.mxu0 0.0
    %790 = vmatprep.subr.mxu0 0.0
    %791 = vmatpush1.xpose.msra.mxu0 0.0
    %792 = vmatprep.subr.mxu0 0.0
    %793 = vmatpush1.xpose.msra.mxu0 0.0
    %794 = vmatprep.subr.mxu0 0.0
    %795 = vmatpush1.xpose.msra.mxu0 0.0
    %796 = vmatprep.subr.mxu0 0.0
    %797 = vmatpush1.xpose.msra.mxu0 0.0
    %798 = vmatprep.subr.mxu0 0.0
    %799 = vmatpush1.xpose.msra.mxu0 0.0
    %800 = vmatprep.subr.mxu0 0.0
    %801 = vmatpush1.xpose.msra.mxu0 0.0
    %802 = vmatprep.subr.mxu0 0.0
    %803 = vmatpush1.xpose.msra.mxu0 0.0
    %804 = vmatprep.subr.mxu0 0.0
    %805 = vmatpush1.xpose.msra.mxu0 0.0
    %806 = vmatprep.subr.mxu0 0.0
    %807 = vmatpush1.xpose.msra.mxu0 0.0
    %808 = vmatprep.subr.mxu0 0.0
    %809 = vmatpush1.xpose.msra.mxu0 0.0
    %810 = vmatprep.subr.mxu0 0.0
    %811 = vmatpush1.xpose.msra.mxu0 0.0
    %812 = vmatprep.mubr.f32.mxu0 0.0
    %813 = vmatmul.mubr.f32.gmra.mrb[0].mxu0 %v743
    %v814 = vpop.f32.mrb[0].mxu0
    %v815 = vadd.f32 %v741, %v814
    %v816 = vpop.f32.mrb[0].mxu0
    %817 = vdwg.mxu0
    %vm818 = vcmask 8192
    %819 = vst.msk [vmem:[#allocation3] sm:$0x1] %vm818, %v815
    // Predicated region
    $region30: #{tpu_custom_call.1} parent=1 // pred_check
      _
    $region31: #{tpu_custom_call.1} parent=1 // pred_check_branch
      %821 = sbr.rel (0) target = $region33
    $region32: #{tpu_custom_call.1} parent=1 // pred_region
      %s823 = ssub.s32 16, 16
      %824 = vsyncadd [#allocation4], %s823
      %s826 = sshll.u32 [#allocation3], 4
      %s827 = int_to_ptr.vmem [resolvable:$true] %s826
      %829 = dma.vmem_to_hbm [thread:$0]  %s827, 16, %s7, [#allocation4]
    $region33: #{tpu_custom_call.1} parent=1 // pred_fallthru
      _
    // Predicated region
    $region34: #{tpu_custom_call.1} parent=1 // pred_check
      _
    $region35: #{tpu_custom_call.1} parent=1 // pred_check_branch
      %831 = sbr.rel (0) target = $region37
    $region36: #{tpu_custom_call.1} parent=1 // pred_region
      %832 = dma.done [#allocation4], 16
    $region37: #{tpu_custom_call.1} parent=1 // pred_fallthru
      _
    %833 = vsyncpa [#allocation4], 1

</llo_original>
